<compile_context>
chip_gen: v7x
topology: tpu7x:2x2x1
jax: 0.10.0
libtpu: 0.0.40
codegen_flags: <defaults>
</compile_context>

<pallas_src>
import functools

import jax
import jax.numpy as jnp
from jax.experimental import pallas as pl
from jax.experimental.pallas import tpu as pltpu

LANE = 128
SUBLANE = 8


def _round_up(v, m):
    return ((v + m - 1) // m) * m


def mlp_kernel(x_ref, w1_ref, w_ref, b_ref, o_ref, *, compute_dtype):
    """Fused fc1 -> ReLU -> fc2 -> fc3 -> fc4(no bias).

    x_ref  : (TM, in_dim)   input dtype (f32), true feature width (no padding)
    w1_ref : (in_dim, Dp)   compute dtype, output dim zero-padded to 128
    w_ref  : (3, Dp, Dp)    compute dtype (w2, w3, w4), zero-padded
    b_ref  : (8, Dp)        f32; rows 0..2 are b1..b3, remaining rows zero
    o_ref  : (TM, Dp)       out dtype (f32 by default), 128-lane dense
    """
    x = x_ref[...].astype(compute_dtype)
    # fc1 + ReLU (bias add / ReLU in f32 on the VPU; matmuls on the MXU).
    h = jnp.dot(x, w1_ref[...], preferred_element_type=jnp.float32)
    h = jnp.maximum(h + b_ref[0:1, :], 0.0)
    # fc2 (no ReLU -- see semantics note).
    h = jnp.dot(h.astype(compute_dtype), w_ref[0],
                preferred_element_type=jnp.float32) + b_ref[1:2, :]
    # fc3 (no ReLU).
    h = jnp.dot(h.astype(compute_dtype), w_ref[1],
                preferred_element_type=jnp.float32) + b_ref[2:3, :]
    # fc4 (bias=False).
    o_ref[...] = jnp.dot(h.astype(compute_dtype), w_ref[2],
                         preferred_element_type=jnp.float32
                         ).astype(o_ref.dtype)


def pack_params(params, compute_dtype=jnp.bfloat16):
    """Pad/pack the parameters ONCE (hoisted out of the per-call path).

    Only *output* feature dims are padded to the 128-lane width; w1 keeps its
    true contraction dim so x never has to be feature-padded.
    """
    in_dim = params["w1"].shape[0]
    out_dims = [params[f"w{i}"].shape[1] for i in range(1, 5)]
    dp = max(_round_up(d, LANE) for d in out_dims)

    w1_p = jnp.zeros((in_dim, dp), compute_dtype)
    w1_p = w1_p.at[:, :out_dims[0]].set(params["w1"].astype(compute_dtype))

    w_rest = jnp.zeros((3, dp, dp), compute_dtype)
    for i, name in enumerate(("w2", "w3", "w4")):
        w = params[name]
        w_rest = w_rest.at[i, :w.shape[0], :w.shape[1]].set(
            w.astype(compute_dtype))

    b_p = jnp.zeros((SUBLANE, dp), jnp.float32)
    for i, name in enumerate(("b1", "b2", "b3")):   # fc4 has bias=False
        b = params[name].reshape(-1)
        b_p = b_p.at[i, :b.shape[0]].set(b.astype(jnp.float32))

    return {
        "w1": w1_p, "w_rest": w_rest, "b": b_p,
        "in_dim": in_dim, "out_dim": out_dims[-1], "dp": dp,
        "compute_dtype": compute_dtype,
    }


def _tile_and_grid(batch, max_tile_rows):
    """Pick (tm, grid) with tm a multiple of 8 (<= cap) and, when the batch is
    big enough to feed both v7x TensorCores, an even grid of >= 2 blocks."""
    n_blocks = pl.cdiv(batch, max_tile_rows)
    if batch >= 2 * SUBLANE:
        n_blocks = max(n_blocks, 2)
    if n_blocks > 1 and n_blocks % 2:
        n_blocks += 1
    tm = _round_up(pl.cdiv(batch, n_blocks), SUBLANE)
    grid_n = pl.cdiv(batch, tm)
    return tm, grid_n


def mynet_forward(x, packed, *, max_tile_rows=1024, out_dtype=jnp.float32):
    """x: (batch, in_dim); packed: result of pack_params() (precomputed once).

    out_dtype=jnp.bfloat16 halves the (128-lane dense) writeback if the
    consumer accepts it (most useful on v5e's lower HBM bandwidth).
    """
    batch, in_dim = x.shape
    assert in_dim == packed["in_dim"]
    dp = packed["dp"]
    compute_dtype = packed["compute_dtype"]

    tm, grid_n = _tile_and_grid(batch, max_tile_rows)
    bp = tm * grid_n
    x_p = x if bp == batch else jnp.pad(x, ((0, bp - batch), (0, 0)))

    # VMEM budget: double-buffered x/out tiles + resident params + headroom
    # for the (tm, dp) f32 intermediates.
    cd_size = jnp.dtype(compute_dtype).itemsize
    tile_bytes = (2 * tm * in_dim * x_p.dtype.itemsize
                  + 2 * tm * dp * jnp.dtype(out_dtype).itemsize)
    param_bytes = 2 * ((packed["w1"].size + packed["w_rest"].size) * cd_size
                       + packed["b"].size * 4)
    scratch_bytes = 4 * tm * dp * 4
    vmem_limit = int(tile_bytes + param_bytes + scratch_bytes + (8 << 20))

    kernel = functools.partial(mlp_kernel, compute_dtype=compute_dtype)

    out_padded = pl.pallas_call(
        kernel,
        out_shape=jax.ShapeDtypeStruct((bp, dp), out_dtype),
        grid=(grid_n,),
        in_specs=[
            pl.BlockSpec((tm, in_dim), lambda i: (i, 0)),    # x: rows tiled, true K
            pl.BlockSpec((in_dim, dp), lambda i: (0, 0)),    # w1: resident
            pl.BlockSpec((3, dp, dp), lambda i: (0, 0, 0)),  # w2..w4: resident
            pl.BlockSpec((SUBLANE, dp), lambda i: (0, 0)),   # biases: resident
        ],
        out_specs=pl.BlockSpec((tm, dp), lambda i: (i, 0)),
        compiler_params=pltpu.CompilerParams(
            dimension_semantics=("parallel",),   # shard batch across TCs on v7x
            vmem_limit_bytes=vmem_limit,
        ),
    )(x_p, packed["w1"], packed["w_rest"], packed["b"])

    return out_padded[:batch, :packed["out_dim"]]


def init_params(key, input_dim, hidden_units, output_dim):
    """Deterministic PyTorch-style init.  Weights stored as (in, out)."""
    dims = [input_dim] + list(hidden_units) + [output_dim]
    keys = jax.random.split(key, 8)
    params = {}
    for i in range(4):
        bound = 1.0 / (dims[i] ** 0.5)
        params[f"w{i + 1}"] = jax.random.uniform(
            keys[2 * i], (dims[i], dims[i + 1]), jnp.float32, -bound, bound)
        if i < 3:  # fc4 has bias=False
            params[f"b{i + 1}"] = jax.random.uniform(
                keys[2 * i + 1], (dims[i + 1],), jnp.float32, -bound, bound)
    return params


def reference_forward(x, params):
    """Plain-JAX reference of the executed Sequential (single ReLU)."""
    h = jnp.maximum(x @ params["w1"] + params["b1"], 0.0)   # fc1 + relu
    h = h @ params["w2"] + params["b2"]                     # fc2
    h = h @ params["w3"] + params["b3"]                     # fc3
    return h @ params["w4"]                                 # fc4 (no bias)


if __name__ == "__main__":
    input_dim = 32
    hidden_units = (64, 48, 32)
    output_dim = 16

    key = jax.random.PRNGKey(0)
    kx, kp, kx2, kx3 = jax.random.split(key, 4)
    params = init_params(kp, input_dim, hidden_units, output_dim)

    # Pack/pad params ONCE per compute dtype (hoisted out of the forward path).
    packed_f32 = pack_params(params, jnp.float32)
    packed_bf16 = pack_params(params, jnp.bfloat16)   # default / fast path

    # Small batch, f32 compute: strict check, grid of 1.
    x = jax.random.normal(kx, (8, input_dim), jnp.float32)
    out = jax.block_until_ready(mynet_forward(x, packed_f32))
    ref = reference_forward(x, params)
    assert out.shape == (8, output_dim)
    assert jnp.allclose(out, ref, atol=1e-5, rtol=1e-5)

    # Non-tile-multiple batch, f32: exercises row padding + an even grid (2).
    x2 = jax.random.normal(kx2, (1000, input_dim), jnp.float32)
    out2 = jax.block_until_ready(mynet_forward(x2, packed_f32))
    ref2 = reference_forward(x2, params)
    assert out2.shape == (1000, output_dim)
    assert jnp.allclose(out2, ref2, atol=1e-4, rtol=1e-4)

    # bf16 weights / matmuls (MXU-native default), f32 accumulate.
    out_bf16 = jax.block_until_ready(mynet_forward(x2, packed_bf16))
    assert jnp.allclose(out_bf16, ref2, atol=1e-1, rtol=1e-1)

    # Larger batch exercises the grid rounded up to an even count (4) + padding.
    x3 = jax.random.normal(kx3, (2500, input_dim), jnp.float32)
    out3 = jax.block_until_ready(mynet_forward(x3, packed_bf16))
    ref3 = reference_forward(x3, params)
    assert out3.shape == (2500, output_dim)
    assert jnp.allclose(out3, ref3, atol=1e-1, rtol=1e-1)

    print("KERNEL_OK")
</pallas_src>

<mosaic_0001>
module attributes {stable_mosaic.version = 11 : i64} {
  func.func @mlp_kernel(%arg0: i32, %arg1: memref<8x32xf32, #tpu.memory_space<vmem>>, %arg2: memref<32x128xf32, #tpu.memory_space<vmem>>, %arg3: memref<3x128x128xf32, #tpu.memory_space<vmem>>, %arg4: memref<8x128xf32, #tpu.memory_space<vmem>>, %arg5: memref<8x128xf32, #tpu.memory_space<vmem>>) attributes {dimension_semantics = [#tpu.dimension_semantics<parallel>], iteration_bounds = array<i64: 1>, scalar_prefetch = 0 : i64, scratch_operands = 0 : i64, tpu.core_type = #tpu.core_type<tc>, window_params = [{transform_indices = @transform_0, window_bounds = array<i64: 8, 32>}, {pipeline_mode = #tpu.pipeline_mode<synchronous>, transform_indices = @transform_1, window_bounds = array<i64: 32, 128>}, {pipeline_mode = #tpu.pipeline_mode<synchronous>, transform_indices = @transform_2, window_bounds = array<i64: 3, 128, 128>}, {pipeline_mode = #tpu.pipeline_mode<synchronous>, transform_indices = @transform_3, window_bounds = array<i64: 8, 128>}, {transform_indices = @transform_4, window_bounds = array<i64: 8, 128>}]} {
    %c0 = arith.constant 0 : index
    %c0_0 = arith.constant 0 : index
    %0 = vector.load %arg1[%c0, %c0_0] : memref<8x32xf32, #tpu.memory_space<vmem>>, vector<8x32xf32>
    %c0_1 = arith.constant 0 : index
    %c0_2 = arith.constant 0 : index
    %1 = vector.load %arg2[%c0_1, %c0_2] : memref<32x128xf32, #tpu.memory_space<vmem>>, vector<32x128xf32>
    %cst = arith.constant dense<0.000000e+00> : vector<8x128xf32>
    %2 = tpu.matmul %0, %1, %cst {dimension_numbers = #tpu.dot_dimension_numbers<[1], [0], [0], [1], [0, 0, 1, 1], [], []>} : vector<8x32xf32>, vector<32x128xf32>, vector<8x128xf32> -> vector<8x128xf32>
    %c0_3 = arith.constant 0 : index
    %c0_4 = arith.constant 0 : index
    %3 = vector.load %arg4[%c0_3, %c0_4] : memref<8x128xf32, #tpu.memory_space<vmem>>, vector<1x128xf32>
    %4 = vector.broadcast %3 : vector<1x128xf32> to vector<8x128xf32>
    %5 = arith.addf %2, %4 : vector<8x128xf32>
    %cst_5 = arith.constant 0.000000e+00 : f32
    %6 = vector.broadcast %cst_5 : f32 to vector<8x128xf32>
    %7 = arith.maximumf %5, %6 : vector<8x128xf32>
    %c0_6 = arith.constant 0 : index
    %c0_7 = arith.constant 0 : index
    %c0_8 = arith.constant 0 : index
    %8 = vector.load %arg3[%c0_6, %c0_7, %c0_8] : memref<3x128x128xf32, #tpu.memory_space<vmem>>, vector<1x128x128xf32>
    %9 = vector.shape_cast %8 : vector<1x128x128xf32> to vector<128x128xf32>
    %cst_9 = arith.constant dense<0.000000e+00> : vector<8x128xf32>
    %10 = tpu.matmul %7, %9, %cst_9 {dimension_numbers = #tpu.dot_dimension_numbers<[1], [0], [0], [1], [0, 0, 1, 1], [], []>} : vector<8x128xf32>, vector<128x128xf32>, vector<8x128xf32> -> vector<8x128xf32>
    %c1 = arith.constant 1 : index
    %c0_10 = arith.constant 0 : index
    %11 = vector.load %arg4[%c1, %c0_10] : memref<8x128xf32, #tpu.memory_space<vmem>>, vector<1x128xf32>
    %12 = vector.broadcast %11 : vector<1x128xf32> to vector<8x128xf32>
    %13 = arith.addf %10, %12 : vector<8x128xf32>
    %c1_11 = arith.constant 1 : index
    %c0_12 = arith.constant 0 : index
    %c0_13 = arith.constant 0 : index
    %14 = vector.load %arg3[%c1_11, %c0_12, %c0_13] : memref<3x128x128xf32, #tpu.memory_space<vmem>>, vector<1x128x128xf32>
    %15 = vector.shape_cast %14 : vector<1x128x128xf32> to vector<128x128xf32>
    %cst_14 = arith.constant dense<0.000000e+00> : vector<8x128xf32>
    %16 = tpu.matmul %13, %15, %cst_14 {dimension_numbers = #tpu.dot_dimension_numbers<[1], [0], [0], [1], [0, 0, 1, 1], [], []>} : vector<8x128xf32>, vector<128x128xf32>, vector<8x128xf32> -> vector<8x128xf32>
    %c2 = arith.constant 2 : index
    %c0_15 = arith.constant 0 : index
    %17 = vector.load %arg4[%c2, %c0_15] : memref<8x128xf32, #tpu.memory_space<vmem>>, vector<1x128xf32>
    %18 = vector.broadcast %17 : vector<1x128xf32> to vector<8x128xf32>
    %19 = arith.addf %16, %18 : vector<8x128xf32>
    %c2_16 = arith.constant 2 : index
    %c0_17 = arith.constant 0 : index
    %c0_18 = arith.constant 0 : index
    %20 = vector.load %arg3[%c2_16, %c0_17, %c0_18] : memref<3x128x128xf32, #tpu.memory_space<vmem>>, vector<1x128x128xf32>
    %21 = vector.shape_cast %20 : vector<1x128x128xf32> to vector<128x128xf32>
    %cst_19 = arith.constant dense<0.000000e+00> : vector<8x128xf32>
    %22 = tpu.matmul %19, %21, %cst_19 {dimension_numbers = #tpu.dot_dimension_numbers<[1], [0], [0], [1], [0, 0, 1, 1], [], []>} : vector<8x128xf32>, vector<128x128xf32>, vector<8x128xf32> -> vector<8x128xf32>
    %c0_20 = arith.constant 0 : index
    %c0_21 = arith.constant 0 : index
    %23 = vector.load %arg5[%c0_20, %c0_21] : memref<8x128xf32, #tpu.memory_space<vmem>>, vector<8x128xf32>
    tpu.vector_store %arg5[%c0_20, %c0_21], %22 {strides = array<i32>} : memref<8x128xf32, #tpu.memory_space<vmem>>, vector<8x128xf32>,
    return
  }
  func.func @transform_0(%arg0: i32) -> (i32, i32) {
    %c0_i32 = arith.constant 0 : i32
    %c0_i32_0 = arith.constant 0 : i32
    return %arg0, %c0_i32 : i32, i32
  }
  func.func @transform_1(%arg0: i32) -> (i32, i32) {
    %c0_i32 = arith.constant 0 : i32
    %c0_i32_0 = arith.constant 0 : i32
    %c0_i32_1 = arith.constant 0 : i32
    return %c0_i32, %c0_i32_0 : i32, i32
  }
  func.func @transform_2(%arg0: i32) -> (i32, i32, i32) {
    %c0_i32 = arith.constant 0 : i32
    %c0_i32_0 = arith.constant 0 : i32
    %c0_i32_1 = arith.constant 0 : i32
    %c0_i32_2 = arith.constant 0 : i32
    return %c0_i32, %c0_i32_0, %c0_i32_1 : i32, i32, i32
  }
  func.func @transform_3(%arg0: i32) -> (i32, i32) {
    %c0_i32 = arith.constant 0 : i32
    %c0_i32_0 = arith.constant 0 : i32
    %c0_i32_1 = arith.constant 0 : i32
    return %c0_i32, %c0_i32_0 : i32, i32
  }
  func.func @transform_4(%arg0: i32) -> (i32, i32) {
    %c0_i32 = arith.constant 0 : i32
    %c0_i32_0 = arith.constant 0 : i32
    return %arg0, %c0_i32 : i32, i32
  }
}

</mosaic_0001>

<llo_original>
// kernel: tpu_custom_call.1
$region0: #{tpu_custom_call.1}
  #allocation0 [shape = 'u32[]', space=smem, size = 0x4, offset = 0x4, fixed_abs, tag = 'smem constant byte address 0x4 - core index']
  #allocation1 [shape = 'u32[144,128]{1,0:T(1,128)}', space=vmem, size = 0x12000, scoped, tag = 'internal scratch']
  %s0 = inlined_call_operand.hbm [shape: f32[8,32], index: 0, kind: input, shape index: {}]
  %s1 = inlined_call_operand.hbm [shape: f32[32,128], index: 1, kind: input, shape index: {}]
  %s2 = inlined_call_operand.hbm [shape: f32[3,128,128], index: 2, kind: input, shape index: {}]
  %s3 = inlined_call_operand.vmem [shape: f32[8,128], index: 3, kind: input, shape index: {}]
  %s4 = inlined_call_operand.hbm [shape: f32[8,128], index: 4, kind: output, shape index: {}]
  %s5 = sld [smem:[#allocation0]]
  $region38: #{tpu_custom_call.1} parent=0
    _
  %s7 = ssub.s32 1, %s5
  %s8 = scalar_select 0, %s7, %s5
  $region1: #{tpu_custom_call.1} parent=0
    #allocation2 [shape = 'u8[4096]{0}', space=vmem, size = 0x1000, scoped, tag = 'input window, operand 0, single buffered']
    #allocation3 [shape = 's32[1]{0}', space=sflag, size = 0x4, scoped, tag = 'scoped memory for tpu_custom_call.1']
    #allocation4 [shape = 's32[1]{0}', space=sflag, size = 0x4, scoped, tag = 'scoped memory for tpu_custom_call.1']
    #allocation5 [shape = 'u8[16384]{0}', space=vmem, size = 0x4000, scoped, tag = 'input window, operand 1, single buffered']
    #allocation6 [shape = 's32[1]{0}', space=sflag, size = 0x4, scoped, tag = 'scoped memory for tpu_custom_call.1']
    #allocation7 [shape = 'u8[196608]{0}', space=vmem, size = 0x30000, scoped, tag = 'input window, operand 2, single buffered']
    #allocation8 [shape = 'u8[4096]{0}', space=vmem, size = 0x1000, scoped, tag = 'output window, operand 0, single buffered']
    %9 = vsyncpa [#allocation3], 0
    %10 = vsyncpa [#allocation6], 0
    %11 = vsyncpa [#allocation4], 0
    // Predicated region
    $region2: #{tpu_custom_call.1} parent=1 // pred_check
      _
    $region3: #{tpu_custom_call.1} parent=1 // pred_check_branch
      %13 = sbr.rel (0) target = $region5
    $region4: #{tpu_custom_call.1} parent=1 // pred_region
      %s15 = ssub.s32 128, 128
      %16 = vsyncadd [#allocation3], %s15
      %s18 = sshll.u32 [#allocation2], 4
      %s19 = int_to_ptr.vmem [resolvable:$true] %s18
      %21 = dma.hbm_to_vmem [thread:$0]  %s0, 128, %s19, [#allocation3]
    $region5: #{tpu_custom_call.1} parent=1 // pred_fallthru
      _
    // Predicated region
    $region6: #{tpu_custom_call.1} parent=1 // pred_check
      _
    $region7: #{tpu_custom_call.1} parent=1 // pred_check_branch
      %23 = sbr.rel (0) target = $region9
    $region8: #{tpu_custom_call.1} parent=1 // pred_region
      %s25 = ssub.s32 512, 512
      %26 = vsyncadd [#allocation6], %s25
      %s27 = sshll.u32 [#allocation5], 4
      %s28 = int_to_ptr.vmem [resolvable:$true] %s27
      %33 = dma.hbm_to_vmem [thread:$0]  %s1, 512, %s28, [#allocation6], 128, 128, 8
    $region9: #{tpu_custom_call.1} parent=1 // pred_fallthru
      _
    // Predicated region
    $region10: #{tpu_custom_call.1} parent=1 // pred_check
      _
    $region11: #{tpu_custom_call.1} parent=1 // pred_check_branch
      %35 = sbr.rel (0) target = $region13
    $region12: #{tpu_custom_call.1} parent=1 // pred_region
      %s37 = ssub.s32 6144, 6144
      %38 = vsyncadd [#allocation6], %s37
      %s39 = sshll.u32 [#allocation7], 4
      %s40 = int_to_ptr.vmem [resolvable:$true] %s39
      %45 = dma.hbm_to_vmem [thread:$0]  %s2, 6144, %s40, [#allocation6], 128, 128, 8
    $region13: #{tpu_custom_call.1} parent=1 // pred_fallthru
      _
    // Predicated region
    $region14: #{tpu_custom_call.1} parent=1 // pred_check
      _
    $region15: #{tpu_custom_call.1} parent=1 // pred_check_branch
      %47 = sbr.rel (0) target = $region17
    $region16: #{tpu_custom_call.1} parent=1 // pred_region
      _
    $region17: #{tpu_custom_call.1} parent=1 // pred_fallthru
      _
    // Predicated region
    $region18: #{tpu_custom_call.1} parent=1 // pred_check
      _
    $region19: #{tpu_custom_call.1} parent=1 // pred_check_branch
      %49 = sbr.rel (0) target = $region21
    $region20: #{tpu_custom_call.1} parent=1 // pred_region
      %50 = dma.done [#allocation3], 128
    $region21: #{tpu_custom_call.1} parent=1 // pred_fallthru
      _
    // Predicated region
    $region22: #{tpu_custom_call.1} parent=1 // pred_check
      _
    $region23: #{tpu_custom_call.1} parent=1 // pred_check_branch
      %52 = sbr.rel (0) target = $region25
    $region24: #{tpu_custom_call.1} parent=1 // pred_region
      %53 = dma.done [#allocation6], 512
    $region25: #{tpu_custom_call.1} parent=1 // pred_fallthru
      _
    // Predicated region
    $region26: #{tpu_custom_call.1} parent=1 // pred_check
      _
    $region27: #{tpu_custom_call.1} parent=1 // pred_check_branch
      %55 = sbr.rel (0) target = $region29
    $region28: #{tpu_custom_call.1} parent=1 // pred_region
      %56 = dma.done [#allocation6], 6144
    $region29: #{tpu_custom_call.1} parent=1 // pred_fallthru
      _
    %v57 = vld [vmem:[#allocation2] sm:$0xff]
    %v58 = vld [vmem:[#allocation5] sm:$0xff]
    %v59 = vld [vmem:[#allocation5 + $0x8] sm:$0xff]
    %v60 = vld [vmem:[#allocation5 + $0x10] sm:$0xff]
    %v61 = vld [vmem:[#allocation5 + $0x18] sm:$0xff]
    %v62 = vld [vmem:[%s3] sm:$0x1]
    %v63 = vlaneseq
    %v64 = vshrl.u32 %v63, 7
    %v65 = vsub.s32 0, %v64
    %v66 = vrot.slane %v62, %v65
    %vm67 = vcmask 261120
    %v69 = vsel %vm67, %v57, 0
    %71 = vmatprep.subr.mxu0 0.0
    %72 = vmatpush1.msra.mxu0 %v58
    %73 = vmatprep.subr.mxu0 0.0
    %74 = vmatpush1.msra.mxu0 %v59
    %75 = vmatprep.subr.mxu0 0.0
    %76 = vmatpush1.msra.mxu0 %v60
    %77 = vmatprep.subr.mxu0 0.0
    %78 = vmatpush1.msra.mxu0 %v61
    %79 = vmatprep.subr.mxu0 0.0
    %80 = vmatpush1.msra.mxu0 0.0
    %81 = vmatprep.subr.mxu0 0.0
    %82 = vmatpush1.msra.mxu0 0.0
    %83 = vmatprep.subr.mxu0 0.0
    %84 = vmatpush1.msra.mxu0 0.0
    %85 = vmatprep.subr.mxu0 0.0
    %86 = vmatpush1.msra.mxu0 0.0
    %87 = vmatprep.subr.mxu0 0.0
    %88 = vmatpush1.msra.mxu0 0.0
    %89 = vmatprep.subr.mxu0 0.0
    %90 = vmatpush1.msra.mxu0 0.0
    %91 = vmatprep.subr.mxu0 0.0
    %92 = vmatpush1.msra.mxu0 0.0
    %93 = vmatprep.subr.mxu0 0.0
    %94 = vmatpush1.msra.mxu0 0.0
    %95 = vmatprep.subr.mxu0 0.0
    %96 = vmatpush1.msra.mxu0 0.0
    %97 = vmatprep.subr.mxu0 0.0
    %98 = vmatpush1.msra.mxu0 0.0
    %99 = vmatprep.subr.mxu0 0.0
    %100 = vmatpush1.msra.mxu0 0.0
    %101 = vmatprep.subr.mxu0 0.0
    %102 = vmatpush1.msra.mxu0 0.0
    %103 = vmatprep.subr.mxu0 0.0
    %104 = vmatpush1.msra.mxu0 0.0
    %105 = vmatprep.subr.mxu0 0.0
    %106 = vmatpush1.msra.mxu0 0.0
    %107 = vmatprep.subr.mxu0 0.0
    %108 = vmatpush1.msra.mxu0 0.0
    %109 = vmatprep.subr.mxu0 0.0
    %110 = vmatpush1.msra.mxu0 0.0
    %111 = vmatprep.subr.mxu0 0.0
    %112 = vmatpush1.msra.mxu0 0.0
    %113 = vmatprep.subr.mxu0 0.0
    %114 = vmatpush1.msra.mxu0 0.0
    %115 = vmatprep.subr.mxu0 0.0
    %116 = vmatpush1.msra.mxu0 0.0
    %117 = vmatprep.subr.mxu0 0.0
    %118 = vmatpush1.msra.mxu0 0.0
    %119 = vmatprep.subr.mxu0 0.0
    %120 = vmatpush1.msra.mxu0 0.0
    %121 = vmatprep.subr.mxu0 0.0
    %122 = vmatpush1.msra.mxu0 0.0
    %123 = vmatprep.subr.mxu0 0.0
    %124 = vmatpush1.msra.mxu0 0.0
    %125 = vmatprep.subr.mxu0 0.0
    %126 = vmatpush1.msra.mxu0 0.0
    %127 = vmatprep.subr.mxu0 0.0
    %128 = vmatpush1.msra.mxu0 0.0
    %129 = vmatprep.subr.mxu0 0.0
    %130 = vmatpush1.msra.mxu0 0.0
    %131 = vmatprep.subr.mxu0 0.0
    %132 = vmatpush1.msra.mxu0 0.0
    %133 = vmatprep.subr.mxu0 0.0
    %134 = vmatpush1.msra.mxu0 0.0
    %135 = vmatprep.mubr.f32.mxu0 0.0
    %136 = vmatmul.mubr.f32.gmra.mrb[0].mxu0 %v69
    %v137 = vpop.f32.mrb[0].mxu0
    %v138 = vadd.f32 %v66, %v137
    %v139 = vpop.f32.mrb[0].mxu0
    %140 = vdwg.mxu0
    %v141 = vmax.f32 %v138, 0.0
    %v142 = vld [vmem:[#allocation7] sm:$0xff]
    %v143 = vld [vmem:[#allocation7 + $0x8] sm:$0xff]
    %v144 = vld [vmem:[#allocation7 + $0x10] sm:$0xff]
    %v145 = vld [vmem:[#allocation7 + $0x18] sm:$0xff]
    %v146 = vld [vmem:[#allocation7 + $0x20] sm:$0xff]
    %v147 = vld [vmem:[#allocation7 + $0x28] sm:$0xff]
    %v148 = vld [vmem:[#allocation7 + $0x30] sm:$0xff]
    %v149 = vld [vmem:[#allocation7 + $0x38] sm:$0xff]
    %v150 = vld [vmem:[#allocation7 + $0x40] sm:$0xff]
    %v151 = vld [vmem:[#allocation7 + $0x48] sm:$0xff]
    %v152 = vld [vmem:[#allocation7 + $0x50] sm:$0xff]
    %v153 = vld [vmem:[#allocation7 + $0x58] sm:$0xff]
    %v154 = vld [vmem:[#allocation7 + $0x60] sm:$0xff]
    %v155 = vld [vmem:[#allocation7 + $0x68] sm:$0xff]
    %v156 = vld [vmem:[#allocation7 + $0x70] sm:$0xff]
    %v157 = vld [vmem:[#allocation7 + $0x78] sm:$0xff]
    %v158 = vld [vmem:[%s3 + $0x1] sm:$0x1]
    %v159 = vlaneseq
    %v160 = vshrl.u32 %v159, 7
    %v161 = vsub.s32 0, %v160
    %v162 = vrot.slane %v158, %v161
    %163 = vmatprep.subr.mxu0 0.0
    %164 = vmatpush1.msra.mxu0 %v142
    %165 = vmatprep.subr.mxu0 0.0
    %166 = vmatpush1.msra.mxu0 %v143
    %167 = vmatprep.subr.mxu0 0.0
    %168 = vmatpush1.msra.mxu0 %v144
    %169 = vmatprep.subr.mxu0 0.0
    %170 = vmatpush1.msra.mxu0 %v145
    %171 = vmatprep.subr.mxu0 0.0
    %172 = vmatpush1.msra.mxu0 %v146
    %173 = vmatprep.subr.mxu0 0.0
    %174 = vmatpush1.msra.mxu0 %v147
    %175 = vmatprep.subr.mxu0 0.0
    %176 = vmatpush1.msra.mxu0 %v148
    %177 = vmatprep.subr.mxu0 0.0
    %178 = vmatpush1.msra.mxu0 %v149
    %179 = vmatprep.subr.mxu0 0.0
    %180 = vmatpush1.msra.mxu0 %v150
    %181 = vmatprep.subr.mxu0 0.0
    %182 = vmatpush1.msra.mxu0 %v151
    %183 = vmatprep.subr.mxu0 0.0
    %184 = vmatpush1.msra.mxu0 %v152
    %185 = vmatprep.subr.mxu0 0.0
    %186 = vmatpush1.msra.mxu0 %v153
    %187 = vmatprep.subr.mxu0 0.0
    %188 = vmatpush1.msra.mxu0 %v154
    %189 = vmatprep.subr.mxu0 0.0
    %190 = vmatpush1.msra.mxu0 %v155
    %191 = vmatprep.subr.mxu0 0.0
    %192 = vmatpush1.msra.mxu0 %v156
    %193 = vmatprep.subr.mxu0 0.0
    %194 = vmatpush1.msra.mxu0 %v157
    %195 = vmatprep.subr.mxu0 0.0
    %196 = vmatpush1.msra.mxu0 0.0
    %197 = vmatprep.subr.mxu0 0.0
    %198 = vmatpush1.msra.mxu0 0.0
    %199 = vmatprep.subr.mxu0 0.0
    %200 = vmatpush1.msra.mxu0 0.0
    %201 = vmatprep.subr.mxu0 0.0
    %202 = vmatpush1.msra.mxu0 0.0
    %203 = vmatprep.subr.mxu0 0.0
    %204 = vmatpush1.msra.mxu0 0.0
    %205 = vmatprep.subr.mxu0 0.0
    %206 = vmatpush1.msra.mxu0 0.0
    %207 = vmatprep.subr.mxu0 0.0
    %208 = vmatpush1.msra.mxu0 0.0
    %209 = vmatprep.subr.mxu0 0.0
    %210 = vmatpush1.msra.mxu0 0.0
    %211 = vmatprep.subr.mxu0 0.0
    %212 = vmatpush1.msra.mxu0 0.0
    %213 = vmatprep.subr.mxu0 0.0
    %214 = vmatpush1.msra.mxu0 0.0
    %215 = vmatprep.subr.mxu0 0.0
    %216 = vmatpush1.msra.mxu0 0.0
    %217 = vmatprep.subr.mxu0 0.0
    %218 = vmatpush1.msra.mxu0 0.0
    %219 = vmatprep.subr.mxu0 0.0
    %220 = vmatpush1.msra.mxu0 0.0
    %221 = vmatprep.subr.mxu0 0.0
    %222 = vmatpush1.msra.mxu0 0.0
    %223 = vmatprep.subr.mxu0 0.0
    %224 = vmatpush1.msra.mxu0 0.0
    %225 = vmatprep.subr.mxu0 0.0
    %226 = vmatpush1.msra.mxu0 0.0
    %227 = vmatprep.mubr.f32.mxu0 0.0
    %228 = vmatmul.mubr.f32.gmra.mrb[0].mxu0 %v141
    %v229 = vpop.f32.mrb[0].mxu0
    %v230 = vadd.f32 %v162, %v229
    %v231 = vpop.f32.mrb[0].mxu0
    %232 = vdwg.mxu0
    %s233 = scalar_lea.vmem [#allocation7], 128
    %v234 = vld [vmem:[%s233] sm:$0xff]
    %v235 = vld [vmem:[%s233 + $0x8] sm:$0xff]
    %v236 = vld [vmem:[%s233 + $0x10] sm:$0xff]
    %v237 = vld [vmem:[%s233 + $0x18] sm:$0xff]
    %v238 = vld [vmem:[%s233 + $0x20] sm:$0xff]
    %v239 = vld [vmem:[%s233 + $0x28] sm:$0xff]
    %v240 = vld [vmem:[%s233 + $0x30] sm:$0xff]
    %v241 = vld [vmem:[%s233 + $0x38] sm:$0xff]
    %v242 = vld [vmem:[%s233 + $0x40] sm:$0xff]
    %v243 = vld [vmem:[%s233 + $0x48] sm:$0xff]
    %v244 = vld [vmem:[%s233 + $0x50] sm:$0xff]
    %v245 = vld [vmem:[%s233 + $0x58] sm:$0xff]
    %v246 = vld [vmem:[%s233 + $0x60] sm:$0xff]
    %v247 = vld [vmem:[%s233 + $0x68] sm:$0xff]
    %v248 = vld [vmem:[%s233 + $0x70] sm:$0xff]
    %v249 = vld [vmem:[%s233 + $0x78] sm:$0xff]
    %v250 = vld [vmem:[%s3 + $0x2] sm:$0x1]
    %v251 = vlaneseq
    %v252 = vshrl.u32 %v251, 7
    %v253 = vsub.s32 0, %v252
    %v254 = vrot.slane %v250, %v253
    %255 = vmatprep.subr.mxu0 0.0
    %256 = vmatpush1.msra.mxu0 %v234
    %257 = vmatprep.subr.mxu0 0.0
    %258 = vmatpush1.msra.mxu0 %v235
    %259 = vmatprep.subr.mxu0 0.0
    %260 = vmatpush1.msra.mxu0 %v236
    %261 = vmatprep.subr.mxu0 0.0
    %262 = vmatpush1.msra.mxu0 %v237
    %263 = vmatprep.subr.mxu0 0.0
    %264 = vmatpush1.msra.mxu0 %v238
    %265 = vmatprep.subr.mxu0 0.0
    %266 = vmatpush1.msra.mxu0 %v239
    %267 = vmatprep.subr.mxu0 0.0
    %268 = vmatpush1.msra.mxu0 %v240
    %269 = vmatprep.subr.mxu0 0.0
    %270 = vmatpush1.msra.mxu0 %v241
    %271 = vmatprep.subr.mxu0 0.0
    %272 = vmatpush1.msra.mxu0 %v242
    %273 = vmatprep.subr.mxu0 0.0
    %274 = vmatpush1.msra.mxu0 %v243
    %275 = vmatprep.subr.mxu0 0.0
    %276 = vmatpush1.msra.mxu0 %v244
    %277 = vmatprep.subr.mxu0 0.0
    %278 = vmatpush1.msra.mxu0 %v245
    %279 = vmatprep.subr.mxu0 0.0
    %280 = vmatpush1.msra.mxu0 %v246
    %281 = vmatprep.subr.mxu0 0.0
    %282 = vmatpush1.msra.mxu0 %v247
    %283 = vmatprep.subr.mxu0 0.0
    %284 = vmatpush1.msra.mxu0 %v248
    %285 = vmatprep.subr.mxu0 0.0
    %286 = vmatpush1.msra.mxu0 %v249
    %287 = vmatprep.subr.mxu0 0.0
    %288 = vmatpush1.msra.mxu0 0.0
    %289 = vmatprep.subr.mxu0 0.0
    %290 = vmatpush1.msra.mxu0 0.0
    %291 = vmatprep.subr.mxu0 0.0
    %292 = vmatpush1.msra.mxu0 0.0
    %293 = vmatprep.subr.mxu0 0.0
    %294 = vmatpush1.msra.mxu0 0.0
    %295 = vmatprep.subr.mxu0 0.0
    %296 = vmatpush1.msra.mxu0 0.0
    %297 = vmatprep.subr.mxu0 0.0
    %298 = vmatpush1.msra.mxu0 0.0
    %299 = vmatprep.subr.mxu0 0.0
    %300 = vmatpush1.msra.mxu0 0.0
    %301 = vmatprep.subr.mxu0 0.0
    %302 = vmatpush1.msra.mxu0 0.0
    %303 = vmatprep.subr.mxu0 0.0
    %304 = vmatpush1.msra.mxu0 0.0
    %305 = vmatprep.subr.mxu0 0.0
    %306 = vmatpush1.msra.mxu0 0.0
    %307 = vmatprep.subr.mxu0 0.0
    %308 = vmatpush1.msra.mxu0 0.0
    %309 = vmatprep.subr.mxu0 0.0
    %310 = vmatpush1.msra.mxu0 0.0
    %311 = vmatprep.subr.mxu0 0.0
    %312 = vmatpush1.msra.mxu0 0.0
    %313 = vmatprep.subr.mxu0 0.0
    %314 = vmatpush1.msra.mxu0 0.0
    %315 = vmatprep.subr.mxu0 0.0
    %316 = vmatpush1.msra.mxu0 0.0
    %317 = vmatprep.subr.mxu0 0.0
    %318 = vmatpush1.msra.mxu0 0.0
    %319 = vmatprep.mubr.f32.mxu0 0.0
    %320 = vmatmul.mubr.f32.gmra.mrb[0].mxu0 %v230
    %v321 = vpop.f32.mrb[0].mxu0
    %v322 = vadd.f32 %v254, %v321
    %v323 = vpop.f32.mrb[0].mxu0
    %324 = vdwg.mxu0
    %s325 = scalar_lea.vmem [#allocation7], 256
    %v326 = vld [vmem:[%s325] sm:$0xff]
    %v327 = vld [vmem:[%s325 + $0x8] sm:$0xff]
    %v328 = vld [vmem:[%s325 + $0x10] sm:$0xff]
    %v329 = vld [vmem:[%s325 + $0x18] sm:$0xff]
    %v330 = vld [vmem:[%s325 + $0x20] sm:$0xff]
    %v331 = vld [vmem:[%s325 + $0x28] sm:$0xff]
    %v332 = vld [vmem:[%s325 + $0x30] sm:$0xff]
    %v333 = vld [vmem:[%s325 + $0x38] sm:$0xff]
    %v334 = vld [vmem:[%s325 + $0x40] sm:$0xff]
    %v335 = vld [vmem:[%s325 + $0x48] sm:$0xff]
    %v336 = vld [vmem:[%s325 + $0x50] sm:$0xff]
    %v337 = vld [vmem:[%s325 + $0x58] sm:$0xff]
    %v338 = vld [vmem:[%s325 + $0x60] sm:$0xff]
    %v339 = vld [vmem:[%s325 + $0x68] sm:$0xff]
    %v340 = vld [vmem:[%s325 + $0x70] sm:$0xff]
    %v341 = vld [vmem:[%s325 + $0x78] sm:$0xff]
    %342 = vmatprep.subr.mxu0 0.0
    %343 = vmatpush1.msra.mxu0 %v326
    %344 = vmatprep.subr.mxu0 0.0
    %345 = vmatpush1.msra.mxu0 %v327
    %346 = vmatprep.subr.mxu0 0.0
    %347 = vmatpush1.msra.mxu0 %v328
    %348 = vmatprep.subr.mxu0 0.0
    %349 = vmatpush1.msra.mxu0 %v329
    %350 = vmatprep.subr.mxu0 0.0
    %351 = vmatpush1.msra.mxu0 %v330
    %352 = vmatprep.subr.mxu0 0.0
    %353 = vmatpush1.msra.mxu0 %v331
    %354 = vmatprep.subr.mxu0 0.0
    %355 = vmatpush1.msra.mxu0 %v332
    %356 = vmatprep.subr.mxu0 0.0
    %357 = vmatpush1.msra.mxu0 %v333
    %358 = vmatprep.subr.mxu0 0.0
    %359 = vmatpush1.msra.mxu0 %v334
    %360 = vmatprep.subr.mxu0 0.0
    %361 = vmatpush1.msra.mxu0 %v335
    %362 = vmatprep.subr.mxu0 0.0
    %363 = vmatpush1.msra.mxu0 %v336
    %364 = vmatprep.subr.mxu0 0.0
    %365 = vmatpush1.msra.mxu0 %v337
    %366 = vmatprep.subr.mxu0 0.0
    %367 = vmatpush1.msra.mxu0 %v338
    %368 = vmatprep.subr.mxu0 0.0
    %369 = vmatpush1.msra.mxu0 %v339
    %370 = vmatprep.subr.mxu0 0.0
    %371 = vmatpush1.msra.mxu0 %v340
    %372 = vmatprep.subr.mxu0 0.0
    %373 = vmatpush1.msra.mxu0 %v341
    %374 = vmatprep.subr.mxu0 0.0
    %375 = vmatpush1.msra.mxu0 0.0
    %376 = vmatprep.subr.mxu0 0.0
    %377 = vmatpush1.msra.mxu0 0.0
    %378 = vmatprep.subr.mxu0 0.0
    %379 = vmatpush1.msra.mxu0 0.0
    %380 = vmatprep.subr.mxu0 0.0
    %381 = vmatpush1.msra.mxu0 0.0
    %382 = vmatprep.subr.mxu0 0.0
    %383 = vmatpush1.msra.mxu0 0.0
    %384 = vmatprep.subr.mxu0 0.0
    %385 = vmatpush1.msra.mxu0 0.0
    %386 = vmatprep.subr.mxu0 0.0
    %387 = vmatpush1.msra.mxu0 0.0
    %388 = vmatprep.subr.mxu0 0.0
    %389 = vmatpush1.msra.mxu0 0.0
    %390 = vmatprep.subr.mxu0 0.0
    %391 = vmatpush1.msra.mxu0 0.0
    %392 = vmatprep.subr.mxu0 0.0
    %393 = vmatpush1.msra.mxu0 0.0
    %394 = vmatprep.subr.mxu0 0.0
    %395 = vmatpush1.msra.mxu0 0.0
    %396 = vmatprep.subr.mxu0 0.0
    %397 = vmatpush1.msra.mxu0 0.0
    %398 = vmatprep.subr.mxu0 0.0
    %399 = vmatpush1.msra.mxu0 0.0
    %400 = vmatprep.subr.mxu0 0.0
    %401 = vmatpush1.msra.mxu0 0.0
    %402 = vmatprep.subr.mxu0 0.0
    %403 = vmatpush1.msra.mxu0 0.0
    %404 = vmatprep.subr.mxu0 0.0
    %405 = vmatpush1.msra.mxu0 0.0
    %406 = vmatprep.mubr.f32.mxu0 0.0
    %407 = vmatmul.mubr.f32.gmra.mrb[0].mxu0 %v322
    %v408 = vpop.f32.mrb[0].mxu0
    %v409 = vadd.f32 0.0, %v408
    %v410 = vpop.f32.mrb[0].mxu0
    %411 = vdwg.mxu0
    %412 = vst [vmem:[#allocation8] sm:$0xff] %v409
    // Predicated region
    $region30: #{tpu_custom_call.1} parent=1 // pred_check
      _
    $region31: #{tpu_custom_call.1} parent=1 // pred_check_branch
      %414 = sbr.rel (0) target = $region33
    $region32: #{tpu_custom_call.1} parent=1 // pred_region
      %s416 = ssub.s32 128, 128
      %417 = vsyncadd [#allocation4], %s416
      %s419 = sshll.u32 [#allocation8], 4
      %s420 = int_to_ptr.vmem [resolvable:$true] %s419
      %422 = dma.vmem_to_hbm [thread:$0]  %s420, 128, %s4, [#allocation4]
    $region33: #{tpu_custom_call.1} parent=1 // pred_fallthru
      _
    // Predicated region
    $region34: #{tpu_custom_call.1} parent=1 // pred_check
      _
    $region35: #{tpu_custom_call.1} parent=1 // pred_check_branch
      %424 = sbr.rel (0) target = $region37
    $region36: #{tpu_custom_call.1} parent=1 // pred_region
      %425 = dma.done [#allocation4], 128
    $region37: #{tpu_custom_call.1} parent=1 // pred_fallthru
      _
    %426 = vsyncpa [#allocation3], 1
    %427 = vsyncpa [#allocation6], 1
    %428 = vsyncpa [#allocation4], 1

</llo_original>
